<compile_context>
chip_gen: v6e
topology: v6e:2x2x1
jax: 0.10.0
libtpu: 0.0.40
codegen_flags: <defaults>
</compile_context>

<pallas_src>
import functools
import math

import jax
import jax.numpy as jnp
from jax import lax
from jax.experimental import pallas as pl
from jax.experimental.pallas import tpu as pltpu


def _power_kernel(x_ref, p_ref, o_ref, *, log_len):
    # x_ref: (rows_blk, g*W)   folded lane-dense input slab
    # p_ref: (g*W, g*w_out)    constant block-diagonal 0/1 pooling matrix
    # o_ref: (rows_blk, g*w_out)
    x = x_ref[...].astype(jnp.float32)          # f32 path (v5e has no bf16 VPU/EUP)
    x2 = x * x                                   # VPU
    # All window sums of all g folded rows in one MXU push.
    pooled = jnp.dot(x2, p_ref[...],
                     preferred_element_type=jnp.float32,
                     precision=lax.Precision.HIGHEST)
    # log(mean) = log(sum) - log(length)  (compile-time constant subtraction).
    o_ref[...] = (jnp.log(pooled) - log_len).astype(o_ref.dtype)


def power_layer(x, length, step):
    """Pallas implementation of PowerLayer.forward for NCHW input x."""
    B, C, H, W = x.shape
    w_out = (W - length) // step + 1
    assert w_out >= 1, "pooling window does not fit"

    N = B * C * H
    LANE, SUB = 128, 8

    # ---- row-fold factor g: g*W is a multiple of 128 (lane-dense, no transpose)
    g = LANE // math.gcd(W, LANE)
    # Grow g while it improves output lane fill, keeps >=2 row blocks possible,
    # divides N exactly, and keeps the pooling matrix small.
    while (N % (2 * g) == 0 and N // (2 * g) >= 2 * SUB
           and g * w_out < LANE
           and (2 * g * W) * (2 * g * w_out) * 4 <= (2 << 20)):
        g *= 2
    gW, gWo = g * W, g * w_out

    # ---- contiguity-preserving fold: reshape only, no HBM transpose ----
    x2d = x.reshape(N, W)
    n_pad = pl.cdiv(N, g) * g
    if n_pad != N:
        # Tail rows padded with 1.0: pooled sum = length -> log-mean = 0 (finite).
        x2d = jnp.pad(x2d, ((0, n_pad - N), (0, 0)), constant_values=1.0)
    rows = n_pad // g
    xf = x2d.reshape(rows, gW)

    # ---- block-diagonal pooling matrix P = kron(I_g, window_mask) ----
    w_idx = jnp.arange(W, dtype=jnp.int32)[:, None]
    starts = (jnp.arange(w_out, dtype=jnp.int32) * step)[None, :]
    base = ((w_idx >= starts) & (w_idx < starts + length)).astype(jnp.float32)
    pool_mat = jnp.kron(jnp.eye(g, dtype=jnp.float32), base)        # (gW, gWo)
    # TODO(synk): for large W (e.g. EEG W >= 1024) tile the K axis / use a banded
    # pooling operand instead of this dense (gW, gWo) matrix, or switch to
    # shifted-slice VPU adds, so VMEM and MXU work stay bounded.

    # ---- slab sizing (per-generation): ~8 MiB, 12 MiB on big-VMEM parts ----
    target_in_bytes = 8 << 20
    vmem_limit = 48 << 20            # safe under v7x's 64 MiB physical VMEM
    try:
        if pltpu.get_tpu_info().vmem_capacity_bytes >= (96 << 20):   # v5e / v6e
            target_in_bytes = 12 << 20
            vmem_limit = 64 << 20
    except Exception:
        pass

    rows_blk = max(SUB, (target_in_bytes // (gW * 4)) // SUB * SUB)
    rows_blk = min(rows_blk, pl.cdiv(rows, SUB) * SUB)
    if rows_blk >= rows and rows >= 2 * SUB:
        # Force >=2 blocks: restores double buffering / uses both v7x TCs.
        rows_blk = pl.cdiv(pl.cdiv(rows, 2), SUB) * SUB
    grid_n = pl.cdiv(rows, rows_blk)
    rows_pad = grid_n * rows_blk
    if rows_pad != rows:
        xf = jnp.pad(xf, ((0, rows_pad - rows), (0, 0)), constant_values=1.0)

    kernel = functools.partial(_power_kernel, log_len=float(math.log(length)))

    out_f = pl.pallas_call(
        kernel,
        out_shape=jax.ShapeDtypeStruct((rows_pad, gWo), x.dtype),
        grid_spec=pltpu.PrefetchScalarGridSpec(
            num_scalar_prefetch=0,
            grid=(grid_n,),
            in_specs=[
                # Folded input slab: rows_blk x (g*W), lane-dense.
                pl.BlockSpec((rows_blk, gW), lambda n: (n, 0)),
                # Pooling matrix: same (only) block every step -> stays resident.
                pl.BlockSpec((gW, gWo), lambda n: (0, 0)),
            ],
            out_specs=pl.BlockSpec((rows_blk, gWo), lambda n: (n, 0)),
        ),
        compiler_params=pltpu.CompilerParams(
            dimension_semantics=("parallel",),   # shards blocks across v7x's 2 TCs
            vmem_limit_bytes=vmem_limit,
        ),
    )(xf, pool_mat)

    # Unfold: (rows_pad, g*w_out) -> (rows_pad*g, w_out) -> slice -> NCHW.
    out = out_f.reshape(rows_pad * g, w_out)[:N]
    return out.reshape(B, C, H, w_out)


def power_layer_ref(x, length, step):
    """Pure-JAX reference (matches torch.log(AvgPool2d((1,length),(1,step))(x**2)))."""
    B, C, H, W = x.shape
    w_out = (W - length) // step + 1
    x2 = x.astype(jnp.float32) ** 2
    wins = jnp.stack(
        [x2[..., j * step: j * step + length].mean(axis=-1) for j in range(w_out)],
        axis=-1,
    )
    return jnp.log(wins).astype(x.dtype)


if __name__ == "__main__":
    # Module config (PowerLayer(dim, length, step); `dim` is unused in forward).
    length, step = 4, 2

    key = jax.random.PRNGKey(0)
    # Small NCHW input: batch=2, channels=4, H=16 (electrodes), W=16 (time).
    # Strictly positive magnitudes so every pooled window is > 0 (finite log).
    x = jax.random.uniform(key, (2, 4, 16, 16), dtype=jnp.float32,
                           minval=0.1, maxval=1.0)

    out = jax.block_until_ready(power_layer(x, length, step))

    ref = power_layer_ref(x, length, step)
    assert out.shape == ref.shape == (2, 4, 16, (16 - length) // step + 1)
    assert jnp.allclose(out, ref, atol=1e-5, rtol=1e-5)

    print("KERNEL_OK")
</pallas_src>

<mosaic_0001>
module attributes {stable_mosaic.version = 11 : i64} {
  func.func @_power_kernel(%arg0: i32, %arg1: memref<8x128xf32, #tpu.memory_space<vmem>>, %arg2: memref<128x56xf32, #tpu.memory_space<vmem>>, %arg3: memref<8x56xf32, #tpu.memory_space<vmem>>) attributes {dimension_semantics = [#tpu.dimension_semantics<parallel>], iteration_bounds = array<i64: 2>, scalar_prefetch = 0 : i64, scratch_operands = 0 : i64, tpu.core_type = #tpu.core_type<tc>, window_params = [{transform_indices = @transform_0, window_bounds = array<i64: 8, 128>}, {pipeline_mode = #tpu.pipeline_mode<synchronous>, transform_indices = @transform_1, window_bounds = array<i64: 128, 56>}, {transform_indices = @transform_2, window_bounds = array<i64: 8, 56>}]} {
    %c0 = arith.constant 0 : index
    %c0_0 = arith.constant 0 : index
    %0 = vector.load %arg1[%c0, %c0_0] : memref<8x128xf32, #tpu.memory_space<vmem>>, vector<8x128xf32>
    %1 = arith.mulf %0, %0 : vector<8x128xf32>
    %c0_1 = arith.constant 0 : index
    %c0_2 = arith.constant 0 : index
    %2 = vector.load %arg2[%c0_1, %c0_2] : memref<128x56xf32, #tpu.memory_space<vmem>>, vector<128x56xf32>
    %cst = arith.constant dense<0.000000e+00> : vector<8x56xf32>
    %3 = tpu.matmul %1, %2, %cst {dimension_numbers = #tpu.dot_dimension_numbers<[1], [0], [0], [1], [0, 0, 1, 1], [], []>, precision = #tpu.contract_precision<fp32>} : vector<8x128xf32>, vector<128x56xf32>, vector<8x56xf32> -> vector<8x56xf32>
    %4 = math.log %3 : vector<8x56xf32>
    %cst_3 = arith.constant 1.38629436 : f32
    %5 = vector.broadcast %cst_3 : f32 to vector<8x56xf32>
    %6 = arith.subf %4, %5 : vector<8x56xf32>
    %c0_4 = arith.constant 0 : index
    %c0_5 = arith.constant 0 : index
    %7 = vector.load %arg3[%c0_4, %c0_5] : memref<8x56xf32, #tpu.memory_space<vmem>>, vector<8x56xf32>
    tpu.vector_store %arg3[%c0_4, %c0_5], %6 {strides = array<i32>} : memref<8x56xf32, #tpu.memory_space<vmem>>, vector<8x56xf32>,
    return
  }
  func.func @transform_0(%arg0: i32) -> (i32, i32) {
    %c0_i32 = arith.constant 0 : i32
    %c0_i32_0 = arith.constant 0 : i32
    return %arg0, %c0_i32 : i32, i32
  }
  func.func @transform_1(%arg0: i32) -> (i32, i32) {
    %c0_i32 = arith.constant 0 : i32
    %c0_i32_0 = arith.constant 0 : i32
    %c0_i32_1 = arith.constant 0 : i32
    return %c0_i32, %c0_i32_0 : i32, i32
  }
  func.func @transform_2(%arg0: i32) -> (i32, i32) {
    %c0_i32 = arith.constant 0 : i32
    %c0_i32_0 = arith.constant 0 : i32
    return %arg0, %c0_i32 : i32, i32
  }
}

</mosaic_0001>

<llo_original>
// kernel: tpu_custom_call.1
$region0: #{tpu_custom_call.1}
  #allocation0 [shape = 'u32[]', space=smem, size = 0x4, offset = 0x4, fixed_abs, tag = 'smem constant byte address 0x4 - core index']
  #allocation1 [shape = 'u32[144,128]{1,0:T(1,128)}', space=vmem, size = 0x12000, scoped, tag = 'internal scratch']
  %s0 = inlined_call_operand.vmem [shape: f32[16,128], index: 0, kind: input, shape index: {}]
  %s1 = inlined_call_operand.vmem [shape: f32[128,56], index: 1, kind: input, shape index: {}]
  %s2 = inlined_call_operand.hbm [shape: f32[16,56], index: 2, kind: output, shape index: {}]
  %s3 = sld [smem:[#allocation0]]
  $region41: #{tpu_custom_call.1} parent=0
    _
  %s5 = ssub.s32 1, %s3
  %s6 = scalar_select 0, %s5, %s3
  $region1: #{tpu_custom_call.1} parent=0
    #allocation2 [shape = 'u8[8192]{0}', space=vmem, size = 0x2000, scoped, tag = 'output window, operand 0']
    #allocation3 [shape = 's32[2]{0}', space=sflag, size = 0x8, scoped, tag = 'scoped memory for tpu_custom_call.1']
    %7 = vsyncpa [#allocation3], 0
    %s8 = scalar_lea.sflag [#allocation3], 1
    %9 = vsyncpa %s8, 0
    loop: start=0, step=1, limit=4
    $region2: #{tpu_custom_call.1} parent=1 // loop_pre_header
      _
    $region3: #{tpu_custom_call.1} parent=1 // loop_header
      %s11 = sphi 0, %s15
      %p12 = scmp.ge.s32.totalorder %s11, 4
      %s21 = sphi 0, %s23
      %s24 = sphi 0, %s21
      %s25 = sphi 0, %s24
      %s41 = sphi 0, %s25
      %s45 = sphi 0, %s45
      %s47 = sphi 0, %s45
      %s48 = sphi 0, %s47
      %s62 = sphi 0, %s48
      %s68 = sphi 0, %s70
      %s71 = sphi 0, %s68
      %s72 = sphi 0, %s71
      %s88 = sphi 0, %s72
    $region4: #{tpu_custom_call.1} parent=1 // loop_header_branch
      %14 = sbr.rel (%p12) target = $region8
    $region5: #{tpu_custom_call.1} parent=1 // loop_body
      %s16 = ssub.s32 %s11, 1
      %s17 = ssub.s32 %s11, 2
      %s18 = sadd.s32 %s11, 1
      %s19 = ssub.s32 %s11, %s18
      %p20 = scmp.eq.s32.totalorder %s19, 0
      %s22 = sadd.s32 %s21, 1
      %s23 = scalar_select %p20, %s21, %s22
      %p26 = pneg %p20
      %p27 = scmp.eq.s32.totalorder %s11, 1
      %p28 = por %p26, %p27
      %p29 = scmp.ne.s32.totalorder %s21, %s24
      %p30 = scmp.eq.s32.totalorder %s11, 0
      %p31 = por %p29, %p30
      %p32 = scmp.ne.s32.totalorder %s21, %s24
      %p33 = scmp.eq.s32.totalorder %s16, 1
      %p34 = por %p32, %p33
      %p35 = scmp.ne.s32.totalorder %s24, %s25
      %p36 = scmp.eq.s32.totalorder %s16, 0
      %p37 = por %p35, %p36
      %p38 = scmp.ne.s32.totalorder %s24, %s25
      %p39 = scmp.eq.s32.totalorder %s17, 1
      %p40 = por %p38, %p39
      %p42 = scmp.ne.s32.totalorder %s25, %s41
      %p43 = scmp.eq.s32.totalorder %s17, 0
      %p44 = por %p42, %p43
      %s46 = sadd.s32 %s45, 1
      %p49 = scmp.eq.s32.totalorder %s11, 1
      %p50 = scmp.ne.s32.totalorder %s45, %s47
      %p51 = scmp.eq.s32.totalorder %s11, 0
      %p52 = por %p50, %p51
      %p53 = scmp.ne.s32.totalorder %s45, %s47
      %p54 = scmp.eq.s32.totalorder %s16, 1
      %p55 = por %p53, %p54
      %p56 = scmp.ne.s32.totalorder %s47, %s48
      %p57 = scmp.eq.s32.totalorder %s16, 0
      %p58 = por %p56, %p57
      %p59 = scmp.ne.s32.totalorder %s47, %s48
      %p60 = scmp.eq.s32.totalorder %s17, 1
      %p61 = por %p59, %p60
      %p63 = scmp.ne.s32.totalorder %s48, %s62
      %p64 = scmp.eq.s32.totalorder %s17, 0
      %p65 = por %p63, %p64
      %s66 = ssub.s32 %s11, %s18
      %p67 = scmp.eq.s32.totalorder %s66, 0
      %s69 = sadd.s32 %s68, 1
      %s70 = scalar_select %p67, %s68, %s69
      %p73 = pneg %p67
      %p74 = scmp.eq.s32.totalorder %s11, 1
      %p75 = por %p73, %p74
      %p76 = scmp.ne.s32.totalorder %s68, %s71
      %p77 = scmp.eq.s32.totalorder %s11, 0
      %p78 = por %p76, %p77
      %p79 = scmp.ne.s32.totalorder %s68, %s71
      %p80 = scmp.eq.s32.totalorder %s16, 1
      %p81 = por %p79, %p80
      %p82 = scmp.ne.s32.totalorder %s71, %s72
      %p83 = scmp.eq.s32.totalorder %s16, 0
      %p84 = por %p82, %p83
      %p85 = scmp.ne.s32.totalorder %s71, %s72
      %p86 = scmp.eq.s32.totalorder %s17, 1
      %p87 = por %p85, %p86
      %p89 = scmp.ne.s32.totalorder %s72, %s88
      %p90 = scmp.eq.s32.totalorder %s17, 0
      %p91 = por %p89, %p90
      %p92 = scmp.le.s32.totalorder 1, %s11
      %p93 = scmp.lt.s32.totalorder %s11, 3
      %p94 = pnand %p92, %p93
      %p95 = pneg %p94
      // Predicated region
      $region9: #{tpu_custom_call.1} parent=5 // pred_check
        _
      $region10: #{tpu_custom_call.1} parent=5 // pred_check_branch
        %97 = sbr.rel (%p94) target = $region12
      $region11: #{tpu_custom_call.1} parent=5 // pred_region
        %s98 = ssub.s32 %s11, 1
        // Predicated region
        $region13: #{tpu_custom_call.1} parent=11 // pred_check
          %p99 = pneg %p58
        $region14: #{tpu_custom_call.1} parent=11 // pred_check_branch
          %101 = sbr.rel (%p99) target = $region16
        $region15: #{tpu_custom_call.1} parent=11 // pred_region
          _
        $region16: #{tpu_custom_call.1} parent=11 // pred_fallthru
          _
      $region12: #{tpu_custom_call.1} parent=5 // pred_fallthru
        _
      %p102 = scmp.lt.s32.totalorder %s11, 2
      // Predicated region
      $region17: #{tpu_custom_call.1} parent=5 // pred_check
        %p103 = pneg %p102
      $region18: #{tpu_custom_call.1} parent=5 // pred_check_branch
        %105 = sbr.rel (%p103) target = $region20
      $region19: #{tpu_custom_call.1} parent=5 // pred_region
        // Predicated region
        $region21: #{tpu_custom_call.1} parent=19 // pred_check
          %p106 = pneg %p31
        $region22: #{tpu_custom_call.1} parent=19 // pred_check_branch
          %108 = sbr.rel (%p106) target = $region24
        $region23: #{tpu_custom_call.1} parent=19 // pred_region
          %p109 = scmp.lt.s32.totalorder %s11, 1
          %s110 = scalar_select %p109, %s11, 1
          %s111 = smul.addr %s110, 8
          %s112 = scalar_lea.vmem %s0, %s111
        $region24: #{tpu_custom_call.1} parent=19 // pred_fallthru
          _
      $region20: #{tpu_custom_call.1} parent=5 // pred_fallthru
        _
      %p113 = scmp.le.s32.totalorder 1, %s11
      %p114 = scmp.lt.s32.totalorder %s11, 3
      %p115 = pnand %p113, %p114
      %p116 = pneg %p115
      // Predicated region
      $region25: #{tpu_custom_call.1} parent=5 // pred_check
        _
      $region26: #{tpu_custom_call.1} parent=5 // pred_check_branch
        %118 = sbr.rel (%p115) target = $region28
      $region27: #{tpu_custom_call.1} parent=5 // pred_region
        %s119 = ssub.s32 %s11, 1
        %p120 = scmp.lt.s32.totalorder %s16, 1
        %s121 = scalar_select %p120, %s16, 1
        %s122 = smul.addr %s121, 8
        %s123 = scalar_lea.vmem %s0, %s122
        %p124 = pneg %p37
        %p125 = pneg %p34
        %p126 = pneg %p58
        %p127 = pneg %p55
        %p128 = pneg %p84
        %p129 = pneg %p81
        %s130 = sand.u32 %s71, 1
        %s131 = scalar_lea.sflag [#allocation3], %s130
        %s132 = sand.u32 %s71, 1
        %s133 = smul.addr %s132, 8
        %s134 = scalar_lea.vmem [#allocation2], %s133
        %p135 = scmp.lt.s32.totalorder %s16, 1
        %s136 = scalar_select %p135, %s16, 1
        %s137 = smul.addr %s136, 8
        %s138 = scalar_lea.vmem %s0, %s137
        %v139 = vld [vmem:[%s138] sm:$0xff]
        %v140 = vmul.f32 %v139, %v139
        %v141 = vld [vmem:[%s1] sm:$0xff]
        %v142 = vld [vmem:[%s1 + $0x8] sm:$0xff]
        %v143 = vld [vmem:[%s1 + $0x10] sm:$0xff]
        %v144 = vld [vmem:[%s1 + $0x18] sm:$0xff]
        %v145 = vld [vmem:[%s1 + $0x20] sm:$0xff]
        %v146 = vld [vmem:[%s1 + $0x28] sm:$0xff]
        %v147 = vld [vmem:[%s1 + $0x30] sm:$0xff]
        %v148 = vld [vmem:[%s1 + $0x38] sm:$0xff]
        %v149 = vld [vmem:[%s1 + $0x40] sm:$0xff]
        %v150 = vld [vmem:[%s1 + $0x48] sm:$0xff]
        %v151 = vld [vmem:[%s1 + $0x50] sm:$0xff]
        %v152 = vld [vmem:[%s1 + $0x58] sm:$0xff]
        %v153 = vld [vmem:[%s1 + $0x60] sm:$0xff]
        %v154 = vld [vmem:[%s1 + $0x68] sm:$0xff]
        %v155 = vld [vmem:[%s1 + $0x70] sm:$0xff]
        %v156 = vld [vmem:[%s1 + $0x78] sm:$0xff]
        %157 = vmatprep.subr.mxu0 0.0
        %v158 = vand.u32 %v156, 4294901760
        %159 = vmatpush1.msra.mxu0 %v158
        %160 = vmatprep.subr.mxu0 0.0
        %v161 = vand.u32 %v155, 4294901760
        %162 = vmatpush1.msra.mxu0 %v161
        %163 = vmatprep.subr.mxu0 0.0
        %v164 = vand.u32 %v154, 4294901760
        %165 = vmatpush1.msra.mxu0 %v164
        %166 = vmatprep.subr.mxu0 0.0
        %v167 = vand.u32 %v153, 4294901760
        %168 = vmatpush1.msra.mxu0 %v167
        %169 = vmatprep.subr.mxu0 0.0
        %v170 = vand.u32 %v152, 4294901760
        %171 = vmatpush1.msra.mxu0 %v170
        %172 = vmatprep.subr.mxu0 0.0
        %v173 = vand.u32 %v151, 4294901760
        %174 = vmatpush1.msra.mxu0 %v173
        %175 = vmatprep.subr.mxu0 0.0
        %v176 = vand.u32 %v150, 4294901760
        %177 = vmatpush1.msra.mxu0 %v176
        %178 = vmatprep.subr.mxu0 0.0
        %v179 = vand.u32 %v149, 4294901760
        %180 = vmatpush1.msra.mxu0 %v179
        %181 = vmatprep.subr.mxu0 0.0
        %v182 = vand.u32 %v148, 4294901760
        %183 = vmatpush1.msra.mxu0 %v182
        %184 = vmatprep.subr.mxu0 0.0
        %v185 = vand.u32 %v147, 4294901760
        %186 = vmatpush1.msra.mxu0 %v185
        %187 = vmatprep.subr.mxu0 0.0
        %v188 = vand.u32 %v146, 4294901760
        %189 = vmatpush1.msra.mxu0 %v188
        %190 = vmatprep.subr.mxu0 0.0
        %v191 = vand.u32 %v145, 4294901760
        %192 = vmatpush1.msra.mxu0 %v191
        %193 = vmatprep.subr.mxu0 0.0
        %v194 = vand.u32 %v144, 4294901760
        %195 = vmatpush1.msra.mxu0 %v194
        %196 = vmatprep.subr.mxu0 0.0
        %v197 = vand.u32 %v143, 4294901760
        %198 = vmatpush1.msra.mxu0 %v197
        %199 = vmatprep.subr.mxu0 0.0
        %v200 = vand.u32 %v142, 4294901760
        %201 = vmatpush1.msra.mxu0 %v200
        %202 = vmatprep.subr.mxu0 0.0
        %v203 = vand.u32 %v141, 4294901760
        %204 = vmatpush1.msra.mxu0 %v203
        %205 = vmatprep.subr.mxu0 0.0
        %206 = vmatpush2.msra.mxu0 0.0
        %207 = vmatprep.subr.mxu0 0.0
        %208 = vmatpush2.msra.mxu0 0.0
        %209 = vmatprep.subr.mxu0 0.0
        %210 = vmatpush2.msra.mxu0 0.0
        %211 = vmatprep.subr.mxu0 0.0
        %212 = vmatpush2.msra.mxu0 0.0
        %213 = vmatprep.subr.mxu0 0.0
        %214 = vmatpush2.msra.mxu0 0.0
        %215 = vmatprep.subr.mxu0 0.0
        %216 = vmatpush2.msra.mxu0 0.0
        %217 = vmatprep.subr.mxu0 0.0
        %218 = vmatpush2.msra.mxu0 0.0
        %219 = vmatprep.subr.mxu0 0.0
        %220 = vmatpush2.msra.mxu0 0.0
        %221 = vmatprep.subr.mxu0 0.0
        %222 = vmatpush2.msra.mxu0 0.0
        %223 = vmatprep.subr.mxu0 0.0
        %224 = vmatpush2.msra.mxu0 0.0
        %225 = vmatprep.subr.mxu0 0.0
        %226 = vmatpush2.msra.mxu0 0.0
        %227 = vmatprep.subr.mxu0 0.0
        %228 = vmatpush2.msra.mxu0 0.0
        %229 = vmatprep.subr.mxu0 0.0
        %230 = vmatpush2.msra.mxu0 0.0
        %231 = vmatprep.subr.mxu0 0.0
        %232 = vmatpush2.msra.mxu0 0.0
        %233 = vmatprep.subr.mxu0 0.0
        %234 = vmatpush2.msra.mxu0 0.0
        %235 = vmatprep.subr.mxu0 0.0
        %236 = vmatpush2.msra.mxu0 0.0
        %237 = vmatprep.mubr.f32.mxu0 0.0
        %v238 = vand.u32 %v140, 4294901760
        %v239 = vsub.f32 %v140, %v238
        %v240 = vand.u32 %v239, 4294901760
        %v241 = vsub.f32 %v239, %v240
        %v242 = vand.u32 %v241, 4294901760
        %243 = vmatmul.mubr.f32.gmra.mxu0 %v242
        %v244 = vpop.f32.mrf.mxu0
        %v245 = vadd.f32 0.0, %v244
        %v246 = vpop.f32.mrf.mxu0
        %247 = vdwg.mxu0
        %248 = vmatprep.subr.mxu0 0.0
        %v249 = vand.u32 %v156, 4294901760
        %v250 = vsub.f32 %v156, %v249
        %v251 = vand.u32 %v250, 4294901760
        %v252 = vsub.f32 %v250, %v251
        %v253 = vand.u32 %v252, 4294901760
        %254 = vmatpush1.msra.mxu0 %v253
        %255 = vmatprep.subr.mxu0 0.0
        %v256 = vand.u32 %v155, 4294901760
        %v257 = vsub.f32 %v155, %v256
        %v258 = vand.u32 %v257, 4294901760
        %v259 = vsub.f32 %v257, %v258
        %v260 = vand.u32 %v259, 4294901760
        %261 = vmatpush1.msra.mxu0 %v260
        %262 = vmatprep.subr.mxu0 0.0
        %v263 = vand.u32 %v154, 4294901760
        %v264 = vsub.f32 %v154, %v263
        %v265 = vand.u32 %v264, 4294901760
        %v266 = vsub.f32 %v264, %v265
        %v267 = vand.u32 %v266, 4294901760
        %268 = vmatpush1.msra.mxu0 %v267
        %269 = vmatprep.subr.mxu0 0.0
        %v270 = vand.u32 %v153, 4294901760
        %v271 = vsub.f32 %v153, %v270
        %v272 = vand.u32 %v271, 4294901760
        %v273 = vsub.f32 %v271, %v272
        %v274 = vand.u32 %v273, 4294901760
        %275 = vmatpush1.msra.mxu0 %v274
        %276 = vmatprep.subr.mxu0 0.0
        %v277 = vand.u32 %v152, 4294901760
        %v278 = vsub.f32 %v152, %v277
        %v279 = vand.u32 %v278, 4294901760
        %v280 = vsub.f32 %v278, %v279
        %v281 = vand.u32 %v280, 4294901760
        %282 = vmatpush1.msra.mxu0 %v281
        %283 = vmatprep.subr.mxu0 0.0
        %v284 = vand.u32 %v151, 4294901760
        %v285 = vsub.f32 %v151, %v284
        %v286 = vand.u32 %v285, 4294901760
        %v287 = vsub.f32 %v285, %v286
        %v288 = vand.u32 %v287, 4294901760
        %289 = vmatpush1.msra.mxu0 %v288
        %290 = vmatprep.subr.mxu0 0.0
        %v291 = vand.u32 %v150, 4294901760
        %v292 = vsub.f32 %v150, %v291
        %v293 = vand.u32 %v292, 4294901760
        %v294 = vsub.f32 %v292, %v293
        %v295 = vand.u32 %v294, 4294901760
        %296 = vmatpush1.msra.mxu0 %v295
        %297 = vmatprep.subr.mxu0 0.0
        %v298 = vand.u32 %v149, 4294901760
        %v299 = vsub.f32 %v149, %v298
        %v300 = vand.u32 %v299, 4294901760
        %v301 = vsub.f32 %v299, %v300
        %v302 = vand.u32 %v301, 4294901760
        %303 = vmatpush1.msra.mxu0 %v302
        %304 = vmatprep.subr.mxu0 0.0
        %v305 = vand.u32 %v148, 4294901760
        %v306 = vsub.f32 %v148, %v305
        %v307 = vand.u32 %v306, 4294901760
        %v308 = vsub.f32 %v306, %v307
        %v309 = vand.u32 %v308, 4294901760
        %310 = vmatpush1.msra.mxu0 %v309
        %311 = vmatprep.subr.mxu0 0.0
        %v312 = vand.u32 %v147, 4294901760
        %v313 = vsub.f32 %v147, %v312
        %v314 = vand.u32 %v313, 4294901760
        %v315 = vsub.f32 %v313, %v314
        %v316 = vand.u32 %v315, 4294901760
        %317 = vmatpush1.msra.mxu0 %v316
        %318 = vmatprep.subr.mxu0 0.0
        %v319 = vand.u32 %v146, 4294901760
        %v320 = vsub.f32 %v146, %v319
        %v321 = vand.u32 %v320, 4294901760
        %v322 = vsub.f32 %v320, %v321
        %v323 = vand.u32 %v322, 4294901760
        %324 = vmatpush1.msra.mxu0 %v323
        %325 = vmatprep.subr.mxu0 0.0
        %v326 = vand.u32 %v145, 4294901760
        %v327 = vsub.f32 %v145, %v326
        %v328 = vand.u32 %v327, 4294901760
        %v329 = vsub.f32 %v327, %v328
        %v330 = vand.u32 %v329, 4294901760
        %331 = vmatpush1.msra.mxu0 %v330
        %332 = vmatprep.subr.mxu0 0.0
        %v333 = vand.u32 %v144, 4294901760
        %v334 = vsub.f32 %v144, %v333
        %v335 = vand.u32 %v334, 4294901760
        %v336 = vsub.f32 %v334, %v335
        %v337 = vand.u32 %v336, 4294901760
        %338 = vmatpush1.msra.mxu0 %v337
        %339 = vmatprep.subr.mxu0 0.0
        %v340 = vand.u32 %v143, 4294901760
        %v341 = vsub.f32 %v143, %v340
        %v342 = vand.u32 %v341, 4294901760
        %v343 = vsub.f32 %v341, %v342
        %v344 = vand.u32 %v343, 4294901760
        %345 = vmatpush1.msra.mxu0 %v344
        %346 = vmatprep.subr.mxu0 0.0
        %v347 = vand.u32 %v142, 4294901760
        %v348 = vsub.f32 %v142, %v347
        %v349 = vand.u32 %v348, 4294901760
        %v350 = vsub.f32 %v348, %v349
        %v351 = vand.u32 %v350, 4294901760
        %352 = vmatpush1.msra.mxu0 %v351
        %353 = vmatprep.subr.mxu0 0.0
        %v354 = vand.u32 %v141, 4294901760
        %v355 = vsub.f32 %v141, %v354
        %v356 = vand.u32 %v355, 4294901760
        %v357 = vsub.f32 %v355, %v356
        %v358 = vand.u32 %v357, 4294901760
        %359 = vmatpush1.msra.mxu0 %v358
        %360 = vmatprep.subr.mxu0 0.0
        %361 = vmatpush2.msra.mxu0 0.0
        %362 = vmatprep.subr.mxu0 0.0
        %363 = vmatpush2.msra.mxu0 0.0
        %364 = vmatprep.subr.mxu0 0.0
        %365 = vmatpush2.msra.mxu0 0.0
        %366 = vmatprep.subr.mxu0 0.0
        %367 = vmatpush2.msra.mxu0 0.0
        %368 = vmatprep.subr.mxu0 0.0
        %369 = vmatpush2.msra.mxu0 0.0
        %370 = vmatprep.subr.mxu0 0.0
        %371 = vmatpush2.msra.mxu0 0.0
        %372 = vmatprep.subr.mxu0 0.0
        %373 = vmatpush2.msra.mxu0 0.0
        %374 = vmatprep.subr.mxu0 0.0
        %375 = vmatpush2.msra.mxu0 0.0
        %376 = vmatprep.subr.mxu0 0.0
        %377 = vmatpush2.msra.mxu0 0.0
        %378 = vmatprep.subr.mxu0 0.0
        %379 = vmatpush2.msra.mxu0 0.0
        %380 = vmatprep.subr.mxu0 0.0
        %381 = vmatpush2.msra.mxu0 0.0
        %382 = vmatprep.subr.mxu0 0.0
        %383 = vmatpush2.msra.mxu0 0.0
        %384 = vmatprep.subr.mxu0 0.0
        %385 = vmatpush2.msra.mxu0 0.0
        %386 = vmatprep.subr.mxu0 0.0
        %387 = vmatpush2.msra.mxu0 0.0
        %388 = vmatprep.subr.mxu0 0.0
        %389 = vmatpush2.msra.mxu0 0.0
        %390 = vmatprep.subr.mxu0 0.0
        %391 = vmatpush2.msra.mxu0 0.0
        %392 = vmatprep.mubr.f32.mxu0 0.0
        %v393 = vand.u32 %v140, 4294901760
        %394 = vmatmul.mubr.f32.gmra.mxu0 %v393
        %v395 = vpop.f32.mrf.mxu0
        %v396 = vadd.f32 %v245, %v395
        %v397 = vpop.f32.mrf.mxu0
        %398 = vdwg.mxu0
        %399 = vmatprep.subr.mxu0 0.0
        %v400 = vand.u32 %v156, 4294901760
        %v401 = vsub.f32 %v156, %v400
        %402 = vmatpush1.msra.mxu0 %v401
        %403 = vmatprep.subr.mxu0 0.0
        %v404 = vand.u32 %v155, 4294901760
        %v405 = vsub.f32 %v155, %v404
        %406 = vmatpush1.msra.mxu0 %v405
        %407 = vmatprep.subr.mxu0 0.0
        %v408 = vand.u32 %v154, 4294901760
        %v409 = vsub.f32 %v154, %v408
        %410 = vmatpush1.msra.mxu0 %v409
        %411 = vmatprep.subr.mxu0 0.0
        %v412 = vand.u32 %v153, 4294901760
        %v413 = vsub.f32 %v153, %v412
        %414 = vmatpush1.msra.mxu0 %v413
        %415 = vmatprep.subr.mxu0 0.0
        %v416 = vand.u32 %v152, 4294901760
        %v417 = vsub.f32 %v152, %v416
        %418 = vmatpush1.msra.mxu0 %v417
        %419 = vmatprep.subr.mxu0 0.0
        %v420 = vand.u32 %v151, 4294901760
        %v421 = vsub.f32 %v151, %v420
        %422 = vmatpush1.msra.mxu0 %v421
        %423 = vmatprep.subr.mxu0 0.0
        %v424 = vand.u32 %v150, 4294901760
        %v425 = vsub.f32 %v150, %v424
        %426 = vmatpush1.msra.mxu0 %v425
        %427 = vmatprep.subr.mxu0 0.0
        %v428 = vand.u32 %v149, 4294901760
        %v429 = vsub.f32 %v149, %v428
        %430 = vmatpush1.msra.mxu0 %v429
        %431 = vmatprep.subr.mxu0 0.0
        %v432 = vand.u32 %v148, 4294901760
        %v433 = vsub.f32 %v148, %v432
        %434 = vmatpush1.msra.mxu0 %v433
        %435 = vmatprep.subr.mxu0 0.0
        %v436 = vand.u32 %v147, 4294901760
        %v437 = vsub.f32 %v147, %v436
        %438 = vmatpush1.msra.mxu0 %v437
        %439 = vmatprep.subr.mxu0 0.0
        %v440 = vand.u32 %v146, 4294901760
        %v441 = vsub.f32 %v146, %v440
        %442 = vmatpush1.msra.mxu0 %v441
        %443 = vmatprep.subr.mxu0 0.0
        %v444 = vand.u32 %v145, 4294901760
        %v445 = vsub.f32 %v145, %v444
        %446 = vmatpush1.msra.mxu0 %v445
        %447 = vmatprep.subr.mxu0 0.0
        %v448 = vand.u32 %v144, 4294901760
        %v449 = vsub.f32 %v144, %v448
        %450 = vmatpush1.msra.mxu0 %v449
        %451 = vmatprep.subr.mxu0 0.0
        %v452 = vand.u32 %v143, 4294901760
        %v453 = vsub.f32 %v143, %v452
        %454 = vmatpush1.msra.mxu0 %v453
        %455 = vmatprep.subr.mxu0 0.0
        %v456 = vand.u32 %v142, 4294901760
        %v457 = vsub.f32 %v142, %v456
        %458 = vmatpush1.msra.mxu0 %v457
        %459 = vmatprep.subr.mxu0 0.0
        %v460 = vand.u32 %v141, 4294901760
        %v461 = vsub.f32 %v141, %v460
        %462 = vmatpush1.msra.mxu0 %v461
        %463 = vmatprep.subr.mxu0 0.0
        %464 = vmatpush2.msra.mxu0 0.0
        %465 = vmatprep.subr.mxu0 0.0
        %466 = vmatpush2.msra.mxu0 0.0
        %467 = vmatprep.subr.mxu0 0.0
        %468 = vmatpush2.msra.mxu0 0.0
        %469 = vmatprep.subr.mxu0 0.0
        %470 = vmatpush2.msra.mxu0 0.0
        %471 = vmatprep.subr.mxu0 0.0
        %472 = vmatpush2.msra.mxu0 0.0
        %473 = vmatprep.subr.mxu0 0.0
        %474 = vmatpush2.msra.mxu0 0.0
        %475 = vmatprep.subr.mxu0 0.0
        %476 = vmatpush2.msra.mxu0 0.0
        %477 = vmatprep.subr.mxu0 0.0
        %478 = vmatpush2.msra.mxu0 0.0
        %479 = vmatprep.subr.mxu0 0.0
        %480 = vmatpush2.msra.mxu0 0.0
        %481 = vmatprep.subr.mxu0 0.0
        %482 = vmatpush2.msra.mxu0 0.0
        %483 = vmatprep.subr.mxu0 0.0
        %484 = vmatpush2.msra.mxu0 0.0
        %485 = vmatprep.subr.mxu0 0.0
        %486 = vmatpush2.msra.mxu0 0.0
        %487 = vmatprep.subr.mxu0 0.0
        %488 = vmatpush2.msra.mxu0 0.0
        %489 = vmatprep.subr.mxu0 0.0
        %490 = vmatpush2.msra.mxu0 0.0
        %491 = vmatprep.subr.mxu0 0.0
        %492 = vmatpush2.msra.mxu0 0.0
        %493 = vmatprep.subr.mxu0 0.0
        %494 = vmatpush2.msra.mxu0 0.0
        %495 = vmatprep.mubr.f32.mxu0 0.0
        %v496 = vand.u32 %v140, 4294901760
        %v497 = vsub.f32 %v140, %v496
        %498 = vmatmul.mubr.f32.gmra.mxu0 %v497
        %v499 = vpop.f32.mrf.mxu0
        %v500 = vadd.f32 %v396, %v499
        %v501 = vpop.f32.mrf.mxu0
        %502 = vdwg.mxu0
        %503 = vmatprep.subr.mxu0 0.0
        %v504 = vand.u32 %v156, 4294901760
        %505 = vmatpush1.msra.mxu0 %v504
        %506 = vmatprep.subr.mxu0 0.0
        %v507 = vand.u32 %v155, 4294901760
        %508 = vmatpush1.msra.mxu0 %v507
        %509 = vmatprep.subr.mxu0 0.0
        %v510 = vand.u32 %v154, 4294901760
        %511 = vmatpush1.msra.mxu0 %v510
        %512 = vmatprep.subr.mxu0 0.0
        %v513 = vand.u32 %v153, 4294901760
        %514 = vmatpush1.msra.mxu0 %v513
        %515 = vmatprep.subr.mxu0 0.0
        %v516 = vand.u32 %v152, 4294901760
        %517 = vmatpush1.msra.mxu0 %v516
        %518 = vmatprep.subr.mxu0 0.0
        %v519 = vand.u32 %v151, 4294901760
        %520 = vmatpush1.msra.mxu0 %v519
        %521 = vmatprep.subr.mxu0 0.0
        %v522 = vand.u32 %v150, 4294901760
        %523 = vmatpush1.msra.mxu0 %v522
        %524 = vmatprep.subr.mxu0 0.0
        %v525 = vand.u32 %v149, 4294901760
        %526 = vmatpush1.msra.mxu0 %v525
        %527 = vmatprep.subr.mxu0 0.0
        %v528 = vand.u32 %v148, 4294901760
        %529 = vmatpush1.msra.mxu0 %v528
        %530 = vmatprep.subr.mxu0 0.0
        %v531 = vand.u32 %v147, 4294901760
        %532 = vmatpush1.msra.mxu0 %v531
        %533 = vmatprep.subr.mxu0 0.0
        %v534 = vand.u32 %v146, 4294901760
        %535 = vmatpush1.msra.mxu0 %v534
        %536 = vmatprep.subr.mxu0 0.0
        %v537 = vand.u32 %v145, 4294901760
        %538 = vmatpush1.msra.mxu0 %v537
        %539 = vmatprep.subr.mxu0 0.0
        %v540 = vand.u32 %v144, 4294901760
        %541 = vmatpush1.msra.mxu0 %v540
        %542 = vmatprep.subr.mxu0 0.0
        %v543 = vand.u32 %v143, 4294901760
        %544 = vmatpush1.msra.mxu0 %v543
        %545 = vmatprep.subr.mxu0 0.0
        %v546 = vand.u32 %v142, 4294901760
        %547 = vmatpush1.msra.mxu0 %v546
        %548 = vmatprep.subr.mxu0 0.0
        %v549 = vand.u32 %v141, 4294901760
        %550 = vmatpush1.msra.mxu0 %v549
        %551 = vmatprep.subr.mxu0 0.0
        %552 = vmatpush2.msra.mxu0 0.0
        %553 = vmatprep.subr.mxu0 0.0
        %554 = vmatpush2.msra.mxu0 0.0
        %555 = vmatprep.subr.mxu0 0.0
        %556 = vmatpush2.msra.mxu0 0.0
        %557 = vmatprep.subr.mxu0 0.0
        %558 = vmatpush2.msra.mxu0 0.0
        %559 = vmatprep.subr.mxu0 0.0
        %560 = vmatpush2.msra.mxu0 0.0
        %561 = vmatprep.subr.mxu0 0.0
        %562 = vmatpush2.msra.mxu0 0.0
        %563 = vmatprep.subr.mxu0 0.0
        %564 = vmatpush2.msra.mxu0 0.0
        %565 = vmatprep.subr.mxu0 0.0
        %566 = vmatpush2.msra.mxu0 0.0
        %567 = vmatprep.subr.mxu0 0.0
        %568 = vmatpush2.msra.mxu0 0.0
        %569 = vmatprep.subr.mxu0 0.0
        %570 = vmatpush2.msra.mxu0 0.0
        %571 = vmatprep.subr.mxu0 0.0
        %572 = vmatpush2.msra.mxu0 0.0
        %573 = vmatprep.subr.mxu0 0.0
        %574 = vmatpush2.msra.mxu0 0.0
        %575 = vmatprep.subr.mxu0 0.0
        %576 = vmatpush2.msra.mxu0 0.0
        %577 = vmatprep.subr.mxu0 0.0
        %578 = vmatpush2.msra.mxu0 0.0
        %579 = vmatprep.subr.mxu0 0.0
        %580 = vmatpush2.msra.mxu0 0.0
        %581 = vmatprep.subr.mxu0 0.0
        %582 = vmatpush2.msra.mxu0 0.0
        %583 = vmatprep.mubr.f32.mxu0 0.0
        %v584 = vand.u32 %v140, 4294901760
        %v585 = vsub.f32 %v140, %v584
        %v586 = vand.u32 %v585, 4294901760
        %587 = vmatmul.mubr.f32.gmra.mxu0 %v586
        %v588 = vpop.f32.mrf.mxu0
        %v589 = vadd.f32 %v500, %v588
        %v590 = vpop.f32.mrf.mxu0
        %591 = vdwg.mxu0
        %592 = vmatprep.subr.mxu0 0.0
        %v593 = vand.u32 %v156, 4294901760
        %v594 = vsub.f32 %v156, %v593
        %v595 = vand.u32 %v594, 4294901760
        %596 = vmatpush1.msra.mxu0 %v595
        %597 = vmatprep.subr.mxu0 0.0
        %v598 = vand.u32 %v155, 4294901760
        %v599 = vsub.f32 %v155, %v598
        %v600 = vand.u32 %v599, 4294901760
        %601 = vmatpush1.msra.mxu0 %v600
        %602 = vmatprep.subr.mxu0 0.0
        %v603 = vand.u32 %v154, 4294901760
        %v604 = vsub.f32 %v154, %v603
        %v605 = vand.u32 %v604, 4294901760
        %606 = vmatpush1.msra.mxu0 %v605
        %607 = vmatprep.subr.mxu0 0.0
        %v608 = vand.u32 %v153, 4294901760
        %v609 = vsub.f32 %v153, %v608
        %v610 = vand.u32 %v609, 4294901760
        %611 = vmatpush1.msra.mxu0 %v610
        %612 = vmatprep.subr.mxu0 0.0
        %v613 = vand.u32 %v152, 4294901760
        %v614 = vsub.f32 %v152, %v613
        %v615 = vand.u32 %v614, 4294901760
        %616 = vmatpush1.msra.mxu0 %v615
        %617 = vmatprep.subr.mxu0 0.0
        %v618 = vand.u32 %v151, 4294901760
        %v619 = vsub.f32 %v151, %v618
        %v620 = vand.u32 %v619, 4294901760
        %621 = vmatpush1.msra.mxu0 %v620
        %622 = vmatprep.subr.mxu0 0.0
        %v623 = vand.u32 %v150, 4294901760
        %v624 = vsub.f32 %v150, %v623
        %v625 = vand.u32 %v624, 4294901760
        %626 = vmatpush1.msra.mxu0 %v625
        %627 = vmatprep.subr.mxu0 0.0
        %v628 = vand.u32 %v149, 4294901760
        %v629 = vsub.f32 %v149, %v628
        %v630 = vand.u32 %v629, 4294901760
        %631 = vmatpush1.msra.mxu0 %v630
        %632 = vmatprep.subr.mxu0 0.0
        %v633 = vand.u32 %v148, 4294901760
        %v634 = vsub.f32 %v148, %v633
        %v635 = vand.u32 %v634, 4294901760
        %636 = vmatpush1.msra.mxu0 %v635
        %637 = vmatprep.subr.mxu0 0.0
        %v638 = vand.u32 %v147, 4294901760
        %v639 = vsub.f32 %v147, %v638
        %v640 = vand.u32 %v639, 4294901760
        %641 = vmatpush1.msra.mxu0 %v640
        %642 = vmatprep.subr.mxu0 0.0
        %v643 = vand.u32 %v146, 4294901760
        %v644 = vsub.f32 %v146, %v643
        %v645 = vand.u32 %v644, 4294901760
        %646 = vmatpush1.msra.mxu0 %v645
        %647 = vmatprep.subr.mxu0 0.0
        %v648 = vand.u32 %v145, 4294901760
        %v649 = vsub.f32 %v145, %v648
        %v650 = vand.u32 %v649, 4294901760
        %651 = vmatpush1.msra.mxu0 %v650
        %652 = vmatprep.subr.mxu0 0.0
        %v653 = vand.u32 %v144, 4294901760
        %v654 = vsub.f32 %v144, %v653
        %v655 = vand.u32 %v654, 4294901760
        %656 = vmatpush1.msra.mxu0 %v655
        %657 = vmatprep.subr.mxu0 0.0
        %v658 = vand.u32 %v143, 4294901760
        %v659 = vsub.f32 %v143, %v658
        %v660 = vand.u32 %v659, 4294901760
        %661 = vmatpush1.msra.mxu0 %v660
        %662 = vmatprep.subr.mxu0 0.0
        %v663 = vand.u32 %v142, 4294901760
        %v664 = vsub.f32 %v142, %v663
        %v665 = vand.u32 %v664, 4294901760
        %666 = vmatpush1.msra.mxu0 %v665
        %667 = vmatprep.subr.mxu0 0.0
        %v668 = vand.u32 %v141, 4294901760
        %v669 = vsub.f32 %v141, %v668
        %v670 = vand.u32 %v669, 4294901760
        %671 = vmatpush1.msra.mxu0 %v670
        %672 = vmatprep.subr.mxu0 0.0
        %673 = vmatpush2.msra.mxu0 0.0
        %674 = vmatprep.subr.mxu0 0.0
        %675 = vmatpush2.msra.mxu0 0.0
        %676 = vmatprep.subr.mxu0 0.0
        %677 = vmatpush2.msra.mxu0 0.0
        %678 = vmatprep.subr.mxu0 0.0
        %679 = vmatpush2.msra.mxu0 0.0
        %680 = vmatprep.subr.mxu0 0.0
        %681 = vmatpush2.msra.mxu0 0.0
        %682 = vmatprep.subr.mxu0 0.0
        %683 = vmatpush2.msra.mxu0 0.0
        %684 = vmatprep.subr.mxu0 0.0
        %685 = vmatpush2.msra.mxu0 0.0
        %686 = vmatprep.subr.mxu0 0.0
        %687 = vmatpush2.msra.mxu0 0.0
        %688 = vmatprep.subr.mxu0 0.0
        %689 = vmatpush2.msra.mxu0 0.0
        %690 = vmatprep.subr.mxu0 0.0
        %691 = vmatpush2.msra.mxu0 0.0
        %692 = vmatprep.subr.mxu0 0.0
        %693 = vmatpush2.msra.mxu0 0.0
        %694 = vmatprep.subr.mxu0 0.0
        %695 = vmatpush2.msra.mxu0 0.0
        %696 = vmatprep.subr.mxu0 0.0
        %697 = vmatpush2.msra.mxu0 0.0
        %698 = vmatprep.subr.mxu0 0.0
        %699 = vmatpush2.msra.mxu0 0.0
        %700 = vmatprep.subr.mxu0 0.0
        %701 = vmatpush2.msra.mxu0 0.0
        %702 = vmatprep.subr.mxu0 0.0
        %703 = vmatpush2.msra.mxu0 0.0
        %704 = vmatprep.mubr.f32.mxu0 0.0
        %v705 = vand.u32 %v140, 4294901760
        %706 = vmatmul.mubr.f32.gmra.mxu0 %v705
        %v707 = vpop.f32.mrf.mxu0
        %v708 = vadd.f32 %v589, %v707
        %v709 = vpop.f32.mrf.mxu0
        %710 = vdwg.mxu0
        %711 = vmatprep.subr.mxu0 0.0
        %v712 = vand.u32 %v156, 4294901760
        %713 = vmatpush1.msra.mxu0 %v712
        %714 = vmatprep.subr.mxu0 0.0
        %v715 = vand.u32 %v155, 4294901760
        %716 = vmatpush1.msra.mxu0 %v715
        %717 = vmatprep.subr.mxu0 0.0
        %v718 = vand.u32 %v154, 4294901760
        %719 = vmatpush1.msra.mxu0 %v718
        %720 = vmatprep.subr.mxu0 0.0
        %v721 = vand.u32 %v153, 4294901760
        %722 = vmatpush1.msra.mxu0 %v721
        %723 = vmatprep.subr.mxu0 0.0
        %v724 = vand.u32 %v152, 4294901760
        %725 = vmatpush1.msra.mxu0 %v724
        %726 = vmatprep.subr.mxu0 0.0
        %v727 = vand.u32 %v151, 4294901760
        %728 = vmatpush1.msra.mxu0 %v727
        %729 = vmatprep.subr.mxu0 0.0
        %v730 = vand.u32 %v150, 4294901760
        %731 = vmatpush1.msra.mxu0 %v730
        %732 = vmatprep.subr.mxu0 0.0
        %v733 = vand.u32 %v149, 4294901760
        %734 = vmatpush1.msra.mxu0 %v733
        %735 = vmatprep.subr.mxu0 0.0
        %v736 = vand.u32 %v148, 4294901760
        %737 = vmatpush1.msra.mxu0 %v736
        %738 = vmatprep.subr.mxu0 0.0
        %v739 = vand.u32 %v147, 4294901760
        %740 = vmatpush1.msra.mxu0 %v739
        %741 = vmatprep.subr.mxu0 0.0
        %v742 = vand.u32 %v146, 4294901760
        %743 = vmatpush1.msra.mxu0 %v742
        %744 = vmatprep.subr.mxu0 0.0
        %v745 = vand.u32 %v145, 4294901760
        %746 = vmatpush1.msra.mxu0 %v745
        %747 = vmatprep.subr.mxu0 0.0
        %v748 = vand.u32 %v144, 4294901760
        %749 = vmatpush1.msra.mxu0 %v748
        %750 = vmatprep.subr.mxu0 0.0
        %v751 = vand.u32 %v143, 4294901760
        %752 = vmatpush1.msra.mxu0 %v751
        %753 = vmatprep.subr.mxu0 0.0
        %v754 = vand.u32 %v142, 4294901760
        %755 = vmatpush1.msra.mxu0 %v754
        %756 = vmatprep.subr.mxu0 0.0
        %v757 = vand.u32 %v141, 4294901760
        %758 = vmatpush1.msra.mxu0 %v757
        %759 = vmatprep.subr.mxu0 0.0
        %760 = vmatpush2.msra.mxu0 0.0
        %761 = vmatprep.subr.mxu0 0.0
        %762 = vmatpush2.msra.mxu0 0.0
        %763 = vmatprep.subr.mxu0 0.0
        %764 = vmatpush2.msra.mxu0 0.0
        %765 = vmatprep.subr.mxu0 0.0
        %766 = vmatpush2.msra.mxu0 0.0
        %767 = vmatprep.subr.mxu0 0.0
        %768 = vmatpush2.msra.mxu0 0.0
        %769 = vmatprep.subr.mxu0 0.0
        %770 = vmatpush2.msra.mxu0 0.0
        %771 = vmatprep.subr.mxu0 0.0
        %772 = vmatpush2.msra.mxu0 0.0
        %773 = vmatprep.subr.mxu0 0.0
        %774 = vmatpush2.msra.mxu0 0.0
        %775 = vmatprep.subr.mxu0 0.0
        %776 = vmatpush2.msra.mxu0 0.0
        %777 = vmatprep.subr.mxu0 0.0
        %778 = vmatpush2.msra.mxu0 0.0
        %779 = vmatprep.subr.mxu0 0.0
        %780 = vmatpush2.msra.mxu0 0.0
        %781 = vmatprep.subr.mxu0 0.0
        %782 = vmatpush2.msra.mxu0 0.0
        %783 = vmatprep.subr.mxu0 0.0
        %784 = vmatpush2.msra.mxu0 0.0
        %785 = vmatprep.subr.mxu0 0.0
        %786 = vmatpush2.msra.mxu0 0.0
        %787 = vmatprep.subr.mxu0 0.0
        %788 = vmatpush2.msra.mxu0 0.0
        %789 = vmatprep.subr.mxu0 0.0
        %790 = vmatpush2.msra.mxu0 0.0
        %791 = vmatprep.mubr.f32.mxu0 0.0
        %v792 = vand.u32 %v140, 4294901760
        %793 = vmatmul.mubr.f32.gmra.mxu0 %v792
        %v794 = vpop.f32.mrf.mxu0
        %v795 = vadd.f32 %v708, %v794
        %v796 = vpop.f32.mrf.mxu0
        %797 = vdwg.mxu0
        %v798 = vlog2.pop %v795
        %v799 = vmul.f32 %v798, 0.6931472
        %v800 = vsub.f32 %v799, 1.3862944
        %vm801 = vcmask 457728
        %802 = vst.msk [vmem:[%s134] sm:$0xff] %vm801, %v800
        %s803 = sand.u32 %s71, 1
        %s804 = scalar_lea.sflag [#allocation3], %s803
        %s805 = sand.u32 %s71, 1
        %s806 = smul.addr %s805, 8
        %s807 = scalar_lea.vmem [#allocation2], %s806
        // Predicated region
        $region29: #{tpu_custom_call.1} parent=27 // pred_check
          %p808 = pneg %p81
        $region30: #{tpu_custom_call.1} parent=27 // pred_check_branch
          %810 = sbr.rel (%p808) target = $region32
        $region31: #{tpu_custom_call.1} parent=27 // pred_region
          %s812 = ssub.s32 128, 128
          %813 = vsyncadd %s804, %s812
          %s814 = smul.addr %s16, 128
          %s815 = scalar_lea.hbm %s2, %s814
          %s817 = sshll.u32 %s807, 4
          %s818 = int_to_ptr.vmem [resolvable:$true] %s817
          %820 = dma.vmem_to_hbm [thread:$0]  %s818, 128, %s815, %s804
        $region32: #{tpu_custom_call.1} parent=27 // pred_fallthru
          _
      $region28: #{tpu_custom_call.1} parent=5 // pred_fallthru
        _
      %p821 = scmp.le.s32.totalorder 2, %s11
      // Predicated region
      $region33: #{tpu_custom_call.1} parent=5 // pred_check
        %p822 = pneg %p821
      $region34: #{tpu_custom_call.1} parent=5 // pred_check_branch
        %824 = sbr.rel (%p822) target = $region36
      $region35: #{tpu_custom_call.1} parent=5 // pred_region
        %s825 = ssub.s32 %s11, 2
        // Predicated region
        $region37: #{tpu_custom_call.1} parent=35 // pred_check
          %p826 = pneg %p87
        $region38: #{tpu_custom_call.1} parent=35 // pred_check_branch
          %828 = sbr.rel (%p826) target = $region40
        $region39: #{tpu_custom_call.1} parent=35 // pred_region
          %s829 = sand.u32 %s72, 1
          %s830 = scalar_lea.sflag [#allocation3], %s829
          %s831 = sand.u32 %s72, 1
          %s832 = smul.addr %s831, 8
          %s833 = scalar_lea.vmem [#allocation2], %s832
          %834 = dma.done %s830, 128
        $region40: #{tpu_custom_call.1} parent=35 // pred_fallthru
          _
      $region36: #{tpu_custom_call.1} parent=5 // pred_fallthru
        _
    $region6: #{tpu_custom_call.1} parent=1 // loop_footer
      %s15 = sadd.s32 1, %s11
    $region7: #{tpu_custom_call.1} parent=1 // loop_footer_branch
      %10 = sbr.rel target = $region3
    $region8: #{tpu_custom_call.1} parent=1 // loop_exit
      _
    %835 = vsyncpa [#allocation3], 1
    %s836 = scalar_lea.sflag [#allocation3], 1
    %837 = vsyncpa %s836, 1

</llo_original>
